<compile_context>
chip_gen: v5e
topology: v5e:2x2
jax: 0.10.0
libtpu: 0.0.40
codegen_flags: <defaults>
</compile_context>

<pallas_src>
import jax
import jax.numpy as jnp
from jax.experimental import pallas as pl
from jax.experimental.pallas import tpu as pltpu

EPS = 0.3
NEG_SLOPE = 0.1
ACTION_SCALER = 2.0

STATE_DIM = 3
ACTION_DIM = 2
HER = True
IN_DIM = STATE_DIM * 2 if HER else STATE_DIM  # 6
H1, H2, H3 = 400, 300, 200

# Padded dims: sublane (contraction) dims to multiples of 16 (bf16 packing),
# final output to 128 so the HBM store is lane-dense (unmasked vst).
IN_PAD = 8          # 6  -> 8
H1P = 400           # already a multiple of 16
H2P = 304           # 300 -> 304
H3P = 208           # 200 -> 208
OUT_PAD = 128       # 2  -> 128 (lane-dense output store)

TILE_B_MAX = 2048   # amortizes ~0.35 us per-grid-step overhead
ALIGN_B = 16        # bf16 output block: keep sublane dim a multiple of 16
VMEM_LIMIT_BYTES = 32 * 1024 * 1024  # raises v5e's 16 MiB default scoped limit


def _round_up(n, m):
    return ((n + m - 1) // m) * m


def _choose_tiling(B):
    """Near-equal 16-aligned batch tiles; >=2 tiles for B>256 (v7x megacore)."""
    num_tiles = max(-(-B // TILE_B_MAX), 1)
    if B > 256 and num_tiles < 2:
        num_tiles = 2
    tile_b = _round_up(-(-B // num_tiles), ALIGN_B)
    b_pad = tile_b * num_tiles
    return tile_b, b_pad, num_tiles


def _leaky_relu(v, slope=NEG_SLOPE):
    return jnp.where(v > 0, v, slope * v)


def actor_kernel(x_ref,
                 w1_ref, b1_ref,
                 w2_ref, b2_ref,
                 w3_ref, b3_ref,
                 w4_ref, b4_ref,
                 out_ref):
    """One batch tile of the MLP.  Weights are bf16 and VMEM-resident across
    the batch grid (constant index_map); biases are f32; all accumulation and
    activation math is f32.  Zero-padded rows/cols are mathematically inert."""
    bf = jnp.bfloat16
    h = x_ref[...].astype(bf)
    h = _leaky_relu(jnp.dot(h, w1_ref[...],
                            preferred_element_type=jnp.float32) + b1_ref[...])
    h = _leaky_relu(jnp.dot(h.astype(bf), w2_ref[...],
                            preferred_element_type=jnp.float32) + b2_ref[...])
    h = _leaky_relu(jnp.dot(h.astype(bf), w3_ref[...],
                            preferred_element_type=jnp.float32) + b3_ref[...])
    h = _leaky_relu(jnp.dot(h.astype(bf), w4_ref[...],
                            preferred_element_type=jnp.float32) + b4_ref[...])
    out_ref[...] = (jnp.tanh(h) * ACTION_SCALER).astype(out_ref.dtype)


@jax.jit
def actor_forward(x, padded_params):
    """x: [B, IN_DIM] f32.  padded_params: weights bf16 [in, out], biases f32."""
    (w1, b1, w2, b2, w3, b3, w4, b4) = padded_params
    B = x.shape[0]
    tile_b, b_pad, num_tiles = _choose_tiling(B)

    x_p = jnp.pad(x.astype(jnp.float32),
                  ((0, b_pad - B), (0, IN_PAD - IN_DIM)))

    const = lambda i: (0, 0)  # weights/biases: fetched once, VMEM-resident
    weight_specs = [
        pl.BlockSpec((IN_PAD, H1P), const), pl.BlockSpec((1, H1P), const),
        pl.BlockSpec((H1P, H2P), const), pl.BlockSpec((1, H2P), const),
        pl.BlockSpec((H2P, H3P), const), pl.BlockSpec((1, H3P), const),
        pl.BlockSpec((H3P, OUT_PAD), const), pl.BlockSpec((1, OUT_PAD), const),
    ]

    weight_elems = (IN_PAD * H1P + H1P * H2P + H2P * H3P + H3P * OUT_PAD)
    bias_elems = H1P + H2P + H3P + OUT_PAD
    cost = pl.CostEstimate(
        flops=2 * b_pad * weight_elems,
        transcendentals=b_pad * OUT_PAD,
        bytes_accessed=(2 * weight_elems + 4 * bias_elems
                        + 4 * b_pad * IN_PAD + 2 * b_pad * OUT_PAD),
    )

    out_padded = pl.pallas_call(
        actor_kernel,
        out_shape=jax.ShapeDtypeStruct((b_pad, OUT_PAD), jnp.bfloat16),
        grid_spec=pltpu.PrefetchScalarGridSpec(
            num_scalar_prefetch=0,
            grid=(num_tiles,),
            in_specs=[pl.BlockSpec((tile_b, IN_PAD), lambda i: (i, 0))]
                     + weight_specs,
            out_specs=pl.BlockSpec((tile_b, OUT_PAD), lambda i: (i, 0)),
        ),
        compiler_params=pltpu.CompilerParams(
            dimension_semantics=("parallel",),
            vmem_limit_bytes=VMEM_LIMIT_BYTES),
        cost_estimate=cost,
    )(x_p, w1, b1, w2, b2, w3, b3, w4, b4)

    return out_padded[:B, :ACTION_DIM].astype(jnp.float32)
    # TODO(synk): for B=1-2 per-env-step serving, hide the ~430 KB weight DMA
    # with the cross-pallas_call prefetch pattern (P10); on v7x optionally
    # store weights as fp8 (per-channel scales folded into biases) for another
    # ~2x on the weight-bound path.


def init_params(key):
    """Deterministic init mirroring the PyTorch module's init scheme.

    PyTorch Linear weight is [out, in]; init_weights uses 1/sqrt(out) bounds
    for fc1/fc2/featx weights, actor_final weight uses uniform(-EPS, EPS),
    biases keep the default uniform(-1/sqrt(in), 1/sqrt(in)).
    Weights stored transposed as [in, out] for the kernel's x @ W layout.
    """
    ks = jax.random.split(key, 8)

    def uni(k, shape, bound):
        return jax.random.uniform(k, shape, jnp.float32, -bound, bound)

    w1 = uni(ks[0], (IN_DIM, H1), 1.0 / H1 ** 0.5)
    b1 = uni(ks[1], (1, H1), 1.0 / IN_DIM ** 0.5)
    w2 = uni(ks[2], (H1, H2), 1.0 / H2 ** 0.5)
    b2 = uni(ks[3], (1, H2), 1.0 / H1 ** 0.5)
    w3 = uni(ks[4], (H2, H3), 1.0 / H3 ** 0.5)
    b3 = uni(ks[5], (1, H3), 1.0 / H2 ** 0.5)
    w4 = uni(ks[6], (H3, ACTION_DIM), EPS)
    b4 = uni(ks[7], (1, ACTION_DIM), 1.0 / H3 ** 0.5)
    return (w1, b1, w2, b2, w3, b3, w4, b4)


def pad_and_cast_params(params):
    """Zero-pad to the kernel shapes; weights -> bf16, biases stay f32.
    Done once, host-side."""
    (w1, b1, w2, b2, w3, b3, w4, b4) = params

    def pad2(a, rows, cols):
        return jnp.pad(a, ((0, rows - a.shape[0]), (0, cols - a.shape[1])))

    return (
        pad2(w1, IN_PAD, H1P).astype(jnp.bfloat16),
        pad2(b1, 1, H1P).astype(jnp.float32),
        pad2(w2, H1P, H2P).astype(jnp.bfloat16),
        pad2(b2, 1, H2P).astype(jnp.float32),
        pad2(w3, H2P, H3P).astype(jnp.bfloat16),
        pad2(b3, 1, H3P).astype(jnp.float32),
        pad2(w4, H3P, OUT_PAD).astype(jnp.bfloat16),
        pad2(b4, 1, OUT_PAD).astype(jnp.float32),
    )


def reference_forward(x, params_f32):
    """Plain-JAX reference using the same numerics as the kernel: bf16 weights,
    f32 biases, f32 accumulation, bf16 final output rounding."""
    (w1, b1, w2, b2, w3, b3, w4, b4) = params_f32
    bf = jnp.bfloat16

    def lin(h, w, b):
        return jnp.dot(h.astype(bf), w.astype(bf),
                       preferred_element_type=jnp.float32) + b

    h = _leaky_relu(lin(x.astype(jnp.float32), w1, b1))
    h = _leaky_relu(lin(h, w2, b2))
    h = _leaky_relu(lin(h, w3, b3))
    h = _leaky_relu(lin(h, w4, b4))
    out = jnp.tanh(h) * ACTION_SCALER
    return out.astype(jnp.bfloat16).astype(jnp.float32)


if __name__ == "__main__":
    key = jax.random.PRNGKey(0)
    k_x, k_p = jax.random.split(key)

    B = 2
    x = jax.random.normal(k_x, (B, IN_DIM), dtype=jnp.float32)
    params_f32 = init_params(k_p)
    params_padded = pad_and_cast_params(params_f32)

    out = actor_forward(x, params_padded)
    out = jax.block_until_ready(out)

    ref = reference_forward(x, params_f32)
    assert out.shape == (B, ACTION_DIM)
    assert jnp.allclose(out, ref, atol=2e-2, rtol=2e-2), "mismatch vs reference"

    print("KERNEL_OK")
</pallas_src>

<mosaic_0001>
module attributes {stable_mosaic.version = 11 : i64} {
  func.func @actor_kernel(%arg0: i32, %arg1: memref<16x8xf32, #tpu.memory_space<vmem>>, %arg2: memref<8x400xbf16, #tpu.memory_space<vmem>>, %arg3: memref<1x400xf32, #tpu.memory_space<vmem>>, %arg4: memref<400x304xbf16, #tpu.memory_space<vmem>>, %arg5: memref<1x304xf32, #tpu.memory_space<vmem>>, %arg6: memref<304x208xbf16, #tpu.memory_space<vmem>>, %arg7: memref<1x208xf32, #tpu.memory_space<vmem>>, %arg8: memref<208x128xbf16, #tpu.memory_space<vmem>>, %arg9: memref<1x128xf32, #tpu.memory_space<vmem>>, %arg10: memref<16x128xbf16, #tpu.memory_space<vmem>>) attributes {dimension_semantics = [#tpu.dimension_semantics<parallel>], iteration_bounds = array<i64: 1>, scalar_prefetch = 0 : i64, scratch_operands = 0 : i64, tpu.core_type = #tpu.core_type<tc>, window_params = [{transform_indices = @transform_0, window_bounds = array<i64: 16, 8>}, {pipeline_mode = #tpu.pipeline_mode<synchronous>, transform_indices = @transform_1, window_bounds = array<i64: 8, 400>}, {pipeline_mode = #tpu.pipeline_mode<synchronous>, transform_indices = @transform_2, window_bounds = array<i64: 1, 400>}, {pipeline_mode = #tpu.pipeline_mode<synchronous>, transform_indices = @transform_3, window_bounds = array<i64: 400, 304>}, {pipeline_mode = #tpu.pipeline_mode<synchronous>, transform_indices = @transform_4, window_bounds = array<i64: 1, 304>}, {pipeline_mode = #tpu.pipeline_mode<synchronous>, transform_indices = @transform_5, window_bounds = array<i64: 304, 208>}, {pipeline_mode = #tpu.pipeline_mode<synchronous>, transform_indices = @transform_6, window_bounds = array<i64: 1, 208>}, {pipeline_mode = #tpu.pipeline_mode<synchronous>, transform_indices = @transform_7, window_bounds = array<i64: 208, 128>}, {pipeline_mode = #tpu.pipeline_mode<synchronous>, transform_indices = @transform_8, window_bounds = array<i64: 1, 128>}, {transform_indices = @transform_9, window_bounds = array<i64: 16, 128>}]} {
    %c0 = arith.constant 0 : index
    %c0_0 = arith.constant 0 : index
    %0 = vector.load %arg1[%c0, %c0_0] : memref<16x8xf32, #tpu.memory_space<vmem>>, vector<16x8xf32>
    %1 = arith.truncf %0 : vector<16x8xf32> to vector<16x8xbf16>
    %c0_1 = arith.constant 0 : index
    %c0_2 = arith.constant 0 : index
    %2 = vector.load %arg2[%c0_1, %c0_2] : memref<8x400xbf16, #tpu.memory_space<vmem>>, vector<8x400xbf16>
    %cst = arith.constant dense<0.000000e+00> : vector<16x400xf32>
    %3 = tpu.matmul %1, %2, %cst {dimension_numbers = #tpu.dot_dimension_numbers<[1], [0], [0], [1], [0, 0, 1, 1], [], []>} : vector<16x8xbf16>, vector<8x400xbf16>, vector<16x400xf32> -> vector<16x400xf32>
    %c0_3 = arith.constant 0 : index
    %c0_4 = arith.constant 0 : index
    %4 = vector.load %arg3[%c0_3, %c0_4] : memref<1x400xf32, #tpu.memory_space<vmem>>, vector<1x400xf32>
    %5 = vector.broadcast %4 : vector<1x400xf32> to vector<16x400xf32>
    %6 = arith.addf %3, %5 : vector<16x400xf32>
    %cst_5 = arith.constant 0.000000e+00 : f32
    %7 = vector.broadcast %cst_5 : f32 to vector<16x400xf32>
    %8 = arith.cmpf ogt, %6, %7 : vector<16x400xf32>
    %cst_6 = arith.constant 1.000000e-01 : f32
    %9 = vector.broadcast %cst_6 : f32 to vector<16x400xf32>
    %10 = arith.mulf %9, %6 : vector<16x400xf32>
    %11 = arith.select %8, %6, %10 : vector<16x400xi1>, vector<16x400xf32>
    %12 = arith.truncf %11 : vector<16x400xf32> to vector<16x400xbf16>
    %c0_7 = arith.constant 0 : index
    %c0_8 = arith.constant 0 : index
    %13 = vector.load %arg4[%c0_7, %c0_8] : memref<400x304xbf16, #tpu.memory_space<vmem>>, vector<400x304xbf16>
    %cst_9 = arith.constant dense<0.000000e+00> : vector<16x304xf32>
    %14 = tpu.matmul %12, %13, %cst_9 {dimension_numbers = #tpu.dot_dimension_numbers<[1], [0], [0], [1], [0, 0, 1, 1], [], []>} : vector<16x400xbf16>, vector<400x304xbf16>, vector<16x304xf32> -> vector<16x304xf32>
    %c0_10 = arith.constant 0 : index
    %c0_11 = arith.constant 0 : index
    %15 = vector.load %arg5[%c0_10, %c0_11] : memref<1x304xf32, #tpu.memory_space<vmem>>, vector<1x304xf32>
    %16 = vector.broadcast %15 : vector<1x304xf32> to vector<16x304xf32>
    %17 = arith.addf %14, %16 : vector<16x304xf32>
    %cst_12 = arith.constant 0.000000e+00 : f32
    %18 = vector.broadcast %cst_12 : f32 to vector<16x304xf32>
    %19 = arith.cmpf ogt, %17, %18 : vector<16x304xf32>
    %cst_13 = arith.constant 1.000000e-01 : f32
    %20 = vector.broadcast %cst_13 : f32 to vector<16x304xf32>
    %21 = arith.mulf %20, %17 : vector<16x304xf32>
    %22 = arith.select %19, %17, %21 : vector<16x304xi1>, vector<16x304xf32>
    %23 = arith.truncf %22 : vector<16x304xf32> to vector<16x304xbf16>
    %c0_14 = arith.constant 0 : index
    %c0_15 = arith.constant 0 : index
    %24 = vector.load %arg6[%c0_14, %c0_15] : memref<304x208xbf16, #tpu.memory_space<vmem>>, vector<304x208xbf16>
    %cst_16 = arith.constant dense<0.000000e+00> : vector<16x208xf32>
    %25 = tpu.matmul %23, %24, %cst_16 {dimension_numbers = #tpu.dot_dimension_numbers<[1], [0], [0], [1], [0, 0, 1, 1], [], []>} : vector<16x304xbf16>, vector<304x208xbf16>, vector<16x208xf32> -> vector<16x208xf32>
    %c0_17 = arith.constant 0 : index
    %c0_18 = arith.constant 0 : index
    %26 = vector.load %arg7[%c0_17, %c0_18] : memref<1x208xf32, #tpu.memory_space<vmem>>, vector<1x208xf32>
    %27 = vector.broadcast %26 : vector<1x208xf32> to vector<16x208xf32>
    %28 = arith.addf %25, %27 : vector<16x208xf32>
    %cst_19 = arith.constant 0.000000e+00 : f32
    %29 = vector.broadcast %cst_19 : f32 to vector<16x208xf32>
    %30 = arith.cmpf ogt, %28, %29 : vector<16x208xf32>
    %cst_20 = arith.constant 1.000000e-01 : f32
    %31 = vector.broadcast %cst_20 : f32 to vector<16x208xf32>
    %32 = arith.mulf %31, %28 : vector<16x208xf32>
    %33 = arith.select %30, %28, %32 : vector<16x208xi1>, vector<16x208xf32>
    %34 = arith.truncf %33 : vector<16x208xf32> to vector<16x208xbf16>
    %c0_21 = arith.constant 0 : index
    %c0_22 = arith.constant 0 : index
    %35 = vector.load %arg8[%c0_21, %c0_22] : memref<208x128xbf16, #tpu.memory_space<vmem>>, vector<208x128xbf16>
    %cst_23 = arith.constant dense<0.000000e+00> : vector<16x128xf32>
    %36 = tpu.matmul %34, %35, %cst_23 {dimension_numbers = #tpu.dot_dimension_numbers<[1], [0], [0], [1], [0, 0, 1, 1], [], []>} : vector<16x208xbf16>, vector<208x128xbf16>, vector<16x128xf32> -> vector<16x128xf32>
    %c0_24 = arith.constant 0 : index
    %c0_25 = arith.constant 0 : index
    %37 = vector.load %arg9[%c0_24, %c0_25] : memref<1x128xf32, #tpu.memory_space<vmem>>, vector<1x128xf32>
    %38 = vector.broadcast %37 : vector<1x128xf32> to vector<16x128xf32>
    %39 = arith.addf %36, %38 : vector<16x128xf32>
    %cst_26 = arith.constant 0.000000e+00 : f32
    %40 = vector.broadcast %cst_26 : f32 to vector<16x128xf32>
    %41 = arith.cmpf ogt, %39, %40 : vector<16x128xf32>
    %cst_27 = arith.constant 1.000000e-01 : f32
    %42 = vector.broadcast %cst_27 : f32 to vector<16x128xf32>
    %43 = arith.mulf %42, %39 : vector<16x128xf32>
    %44 = arith.select %41, %39, %43 : vector<16x128xi1>, vector<16x128xf32>
    %45 = math.tanh %44 : vector<16x128xf32>
    %cst_28 = arith.constant 2.000000e+00 : f32
    %46 = vector.broadcast %cst_28 : f32 to vector<16x128xf32>
    %47 = arith.mulf %45, %46 : vector<16x128xf32>
    %48 = arith.truncf %47 : vector<16x128xf32> to vector<16x128xbf16>
    %c0_29 = arith.constant 0 : index
    %c0_30 = arith.constant 0 : index
    %49 = vector.load %arg10[%c0_29, %c0_30] : memref<16x128xbf16, #tpu.memory_space<vmem>>, vector<16x128xbf16>
    tpu.vector_store %arg10[%c0_29, %c0_30], %48 {strides = array<i32>} : memref<16x128xbf16, #tpu.memory_space<vmem>>, vector<16x128xbf16>,
    return
  }
  func.func @transform_0(%arg0: i32) -> (i32, i32) {
    %c0_i32 = arith.constant 0 : i32
    %c0_i32_0 = arith.constant 0 : i32
    return %arg0, %c0_i32 : i32, i32
  }
  func.func @transform_1(%arg0: i32) -> (i32, i32) {
    %c0_i32 = arith.constant 0 : i32
    %c0_i32_0 = arith.constant 0 : i32
    %c0_i32_1 = arith.constant 0 : i32
    return %c0_i32, %c0_i32_0 : i32, i32
  }
  func.func @transform_2(%arg0: i32) -> (i32, i32) {
    %c0_i32 = arith.constant 0 : i32
    %c0_i32_0 = arith.constant 0 : i32
    %c0_i32_1 = arith.constant 0 : i32
    return %c0_i32, %c0_i32_0 : i32, i32
  }
  func.func @transform_3(%arg0: i32) -> (i32, i32) {
    %c0_i32 = arith.constant 0 : i32
    %c0_i32_0 = arith.constant 0 : i32
    %c0_i32_1 = arith.constant 0 : i32
    return %c0_i32, %c0_i32_0 : i32, i32
  }
  func.func @transform_4(%arg0: i32) -> (i32, i32) {
    %c0_i32 = arith.constant 0 : i32
    %c0_i32_0 = arith.constant 0 : i32
    %c0_i32_1 = arith.constant 0 : i32
    return %c0_i32, %c0_i32_0 : i32, i32
  }
  func.func @transform_5(%arg0: i32) -> (i32, i32) {
    %c0_i32 = arith.constant 0 : i32
    %c0_i32_0 = arith.constant 0 : i32
    %c0_i32_1 = arith.constant 0 : i32
    return %c0_i32, %c0_i32_0 : i32, i32
  }
  func.func @transform_6(%arg0: i32) -> (i32, i32) {
    %c0_i32 = arith.constant 0 : i32
    %c0_i32_0 = arith.constant 0 : i32
    %c0_i32_1 = arith.constant 0 : i32
    return %c0_i32, %c0_i32_0 : i32, i32
  }
  func.func @transform_7(%arg0: i32) -> (i32, i32) {
    %c0_i32 = arith.constant 0 : i32
    %c0_i32_0 = arith.constant 0 : i32
    %c0_i32_1 = arith.constant 0 : i32
    return %c0_i32, %c0_i32_0 : i32, i32
  }
  func.func @transform_8(%arg0: i32) -> (i32, i32) {
    %c0_i32 = arith.constant 0 : i32
    %c0_i32_0 = arith.constant 0 : i32
    %c0_i32_1 = arith.constant 0 : i32
    return %c0_i32, %c0_i32_0 : i32, i32
  }
  func.func @transform_9(%arg0: i32) -> (i32, i32) {
    %c0_i32 = arith.constant 0 : i32
    %c0_i32_0 = arith.constant 0 : i32
    return %arg0, %c0_i32 : i32, i32
  }
}

</mosaic_0001>

<llo_original>
// kernel: actor_forward.1
$region0: #{actor_forward.1}
  #allocation0 [shape = 'u32[]', space=smem, size = 0x4, offset = 0x4, fixed_abs, tag = 'smem constant byte address 0x4 - core index']
  #allocation1 [shape = 'u32[72,128]{1,0:T(1,128)}', space=vmem, size = 0x9000, scoped, tag = 'internal scratch']
  %s0 = inlined_call_operand.vmem [shape: f32[16,8], index: 0, kind: input, shape index: {}]
  %s1 = inlined_call_operand.vmem [shape: bf16[8,400], index: 1, kind: input, shape index: {}]
  %s2 = inlined_call_operand.vmem [shape: f32[1,400], index: 2, kind: input, shape index: {}]
  %s3 = inlined_call_operand.hbm [shape: bf16[400,304], index: 3, kind: input, shape index: {}]
  %s4 = inlined_call_operand.hbm [shape: f32[1,304], index: 4, kind: input, shape index: {}]
  %s5 = inlined_call_operand.hbm [shape: bf16[304,208], index: 5, kind: input, shape index: {}]
  %s6 = inlined_call_operand.vmem [shape: f32[1,208], index: 6, kind: input, shape index: {}]
  %s7 = inlined_call_operand.hbm [shape: bf16[208,128], index: 7, kind: input, shape index: {}]
  %s8 = inlined_call_operand.vmem [shape: f32[1,128], index: 8, kind: input, shape index: {}]
  %s9 = inlined_call_operand.vmem [shape: bf16[16,128], index: 9, kind: output, shape index: {}]
  %s10 = sld [smem:[#allocation0]]
  $region62: #{actor_forward.1} parent=0
    _
  %s12 = ssub.s32 1, %s10
  %s13 = scalar_select 0, %s12, %s10
  $region1: #{actor_forward.1} parent=0
    #allocation2 [shape = 'u8[307200]{0}', space=vmem, size = 0x4b000, scoped, tag = 'input window, operand 3, single buffered']
    #allocation3 [shape = 's32[1]{0}', space=sflag, size = 0x4, scoped, tag = 'scoped memory for actor_forward.1']
    #allocation4 [shape = 'u8[1536]{0}', space=vmem, size = 0x800, scoped, tag = 'input window, operand 4, single buffered']
    #allocation5 [shape = 's32[1]{0}', space=sflag, size = 0x4, scoped, tag = 'scoped memory for actor_forward.1']
    #allocation6 [shape = 'u8[155648]{0}', space=vmem, size = 0x26000, scoped, tag = 'input window, operand 5, single buffered']
    #allocation7 [shape = 'u8[53248]{0}', space=vmem, size = 0xd000, scoped, tag = 'input window, operand 7, single buffered']
    #allocation8 [shape = 's32[1]{0}', space=sflag, size = 0x4, scoped, tag = 'scoped memory for actor_forward.1']
    %14 = vsyncpa [#allocation3], 0
    %15 = vsyncpa [#allocation5], 0
    %16 = vsyncpa [#allocation8], 0
    // Predicated region
    $region2: #{actor_forward.1} parent=1 // pred_check
      _
    $region3: #{actor_forward.1} parent=1 // pred_check_branch
      %18 = sbr.rel (0) target = $region5
    $region4: #{actor_forward.1} parent=1 // pred_region
      _
    $region5: #{actor_forward.1} parent=1 // pred_fallthru
      _
    // Predicated region
    $region6: #{actor_forward.1} parent=1 // pred_check
      _
    $region7: #{actor_forward.1} parent=1 // pred_check_branch
      %20 = sbr.rel (0) target = $region9
    $region8: #{actor_forward.1} parent=1 // pred_region
      _
    $region9: #{actor_forward.1} parent=1 // pred_fallthru
      _
    // Predicated region
    $region10: #{actor_forward.1} parent=1 // pred_check
      _
    $region11: #{actor_forward.1} parent=1 // pred_check_branch
      %22 = sbr.rel (0) target = $region13
    $region12: #{actor_forward.1} parent=1 // pred_region
      _
    $region13: #{actor_forward.1} parent=1 // pred_fallthru
      _
    // Predicated region
    $region14: #{actor_forward.1} parent=1 // pred_check
      _
    $region15: #{actor_forward.1} parent=1 // pred_check_branch
      %24 = sbr.rel (0) target = $region17
    $region16: #{actor_forward.1} parent=1 // pred_region
      %26 = vsyncadd [#allocation3], 0
      %s27 = sshll.u32 %s3, 4
      %s28 = int_to_ptr.hbm [resolvable:$true] %s27
      %s29 = sshll.u32 [#allocation2], 4
      %s30 = int_to_ptr.vmem [resolvable:$true] %s29
      %35 = dma.hbm_to_vmem [thread:$0]  %s28, 9600, %s30, [#allocation3], 192, 192, 12
    $region17: #{actor_forward.1} parent=1 // pred_fallthru
      _
    // Predicated region
    $region18: #{actor_forward.1} parent=1 // pred_check
      _
    $region19: #{actor_forward.1} parent=1 // pred_check_branch
      %37 = sbr.rel (0) target = $region21
    $region20: #{actor_forward.1} parent=1 // pred_region
      %39 = vsyncadd [#allocation5], 0
      %s41 = sshll.u32 %s4, 4
      %s42 = int_to_ptr.hbm [resolvable:$true] %s41
      %s43 = sshll.u32 [#allocation4], 4
      %s44 = int_to_ptr.vmem [resolvable:$true] %s43
      %46 = dma.hbm_to_vmem [thread:$0]  %s42, 48, %s44, [#allocation5]
    $region21: #{actor_forward.1} parent=1 // pred_fallthru
      _
    // Predicated region
    $region22: #{actor_forward.1} parent=1 // pred_check
      _
    $region23: #{actor_forward.1} parent=1 // pred_check_branch
      %48 = sbr.rel (0) target = $region25
    $region24: #{actor_forward.1} parent=1 // pred_region
      %50 = vsyncadd [#allocation5], 0
      %s51 = sshll.u32 %s5, 4
      %s52 = int_to_ptr.hbm [resolvable:$true] %s51
      %s53 = sshll.u32 [#allocation6], 4
      %s54 = int_to_ptr.vmem [resolvable:$true] %s53
      %59 = dma.hbm_to_vmem [thread:$0]  %s52, 4864, %s54, [#allocation5], 128, 128, 8
    $region25: #{actor_forward.1} parent=1 // pred_fallthru
      _
    // Predicated region
    $region26: #{actor_forward.1} parent=1 // pred_check
      _
    $region27: #{actor_forward.1} parent=1 // pred_check_branch
      %61 = sbr.rel (0) target = $region29
    $region28: #{actor_forward.1} parent=1 // pred_region
      _
    $region29: #{actor_forward.1} parent=1 // pred_fallthru
      _
    // Predicated region
    $region30: #{actor_forward.1} parent=1 // pred_check
      _
    $region31: #{actor_forward.1} parent=1 // pred_check_branch
      %63 = sbr.rel (0) target = $region33
    $region32: #{actor_forward.1} parent=1 // pred_region
      %65 = vsyncadd [#allocation8], 0
      %s66 = sshll.u32 %s7, 4
      %s67 = int_to_ptr.hbm [resolvable:$true] %s66
      %s68 = sshll.u32 [#allocation7], 4
      %s69 = int_to_ptr.vmem [resolvable:$true] %s68
      %74 = dma.hbm_to_vmem [thread:$0]  %s67, 1664, %s69, [#allocation8], 64, 64, 4
    $region33: #{actor_forward.1} parent=1 // pred_fallthru
      _
    // Predicated region
    $region34: #{actor_forward.1} parent=1 // pred_check
      _
    $region35: #{actor_forward.1} parent=1 // pred_check_branch
      %76 = sbr.rel (0) target = $region37
    $region36: #{actor_forward.1} parent=1 // pred_region
      _
    $region37: #{actor_forward.1} parent=1 // pred_fallthru
      _
    // Predicated region
    $region38: #{actor_forward.1} parent=1 // pred_check
      _
    $region39: #{actor_forward.1} parent=1 // pred_check_branch
      %78 = sbr.rel (0) target = $region41
    $region40: #{actor_forward.1} parent=1 // pred_region
      %80 = dma.done [#allocation3], 9600
    $region41: #{actor_forward.1} parent=1 // pred_fallthru
      _
    // Predicated region
    $region42: #{actor_forward.1} parent=1 // pred_check
      _
    $region43: #{actor_forward.1} parent=1 // pred_check_branch
      %82 = sbr.rel (0) target = $region45
    $region44: #{actor_forward.1} parent=1 // pred_region
      %84 = dma.done [#allocation5], 48
    $region45: #{actor_forward.1} parent=1 // pred_fallthru
      _
    // Predicated region
    $region46: #{actor_forward.1} parent=1 // pred_check
      _
    $region47: #{actor_forward.1} parent=1 // pred_check_branch
      %86 = sbr.rel (0) target = $region49
    $region48: #{actor_forward.1} parent=1 // pred_region
      %88 = dma.done [#allocation5], 4864
    $region49: #{actor_forward.1} parent=1 // pred_fallthru
      _
    // Predicated region
    $region50: #{actor_forward.1} parent=1 // pred_check
      _
    $region51: #{actor_forward.1} parent=1 // pred_check_branch
      %90 = sbr.rel (0) target = $region53
    $region52: #{actor_forward.1} parent=1 // pred_region
      %92 = dma.done [#allocation8], 1664
    $region53: #{actor_forward.1} parent=1 // pred_fallthru
      _
    %v94 = vld [vmem:[%s0] sm:$0xff]
    %v95 = vld [vmem:[%s0 + $0x8] sm:$0xff]
    %v96 = vpack.c.bf16 %v95, %v94
    %v97 = vld [vmem:[%s1] sm:$0xff]
    %v98 = vld [vmem:[%s1 + $0x8] sm:$0xff]
    %v99 = vld [vmem:[%s2] sm:$0xf]
    %v101 = vperm.slane %v99, 0
    %v102 = vperm.slane %v99, 1
    %v103 = vperm.slane %v99, 2
    %v104 = vperm.slane %v99, 3
    %v111 = vunpack.c.l.b16 %v97
    %v112 = vunpack.c.h.b16 %v97
    %v113 = vunpack.c.l.b16 %v98
    %v114 = vunpack.c.h.b16 %v98
    %v115 = vpack.c.b16 %v111, %v111
    %v116 = vpack.c.b16 %v112, %v112
    %v117 = vpack.c.b16 %v113, %v113
    %v118 = vpack.c.b16 %v114, %v114
    %vm119 = vcmask 64512
    %v121 = vsel %vm119, %v96, 0
    %vm123 = vcmask 1043456
    %v125 = vsel %vm123, %v115, 0
    %v128 = vsel %vm123, %v116, 0
    %v131 = vsel %vm123, %v117, 0
    %v134 = vsel %vm123, %v118, 0
    %136 = vmatpush.bf16.msra.mxu0 0
    %137 = vmatpush.bf16.msra.mxu0 0
    %138 = vmatpush.bf16.msra.mxu0 0
    %139 = vmatpush.bf16.msra.mxu0 0
    %140 = vmatpush.bf16.msra.mxu0 0
    %141 = vmatpush.bf16.msra.mxu0 0
    %142 = vmatpush.bf16.msra.mxu0 0
    %143 = vmatpush.bf16.msra.mxu0 %v125
    %144 = vmatmul.bf16.gmra.mxu0 %v121
    %v145 = vpop.f32.mrf.mxu0
    %v146 = vadd.f32 %v101, %v145
    %v147 = vpop.f32.mrf.mxu0
    %v148 = vadd.f32 %v101, %v147
    %149 = vdwg.mxu0
    %150 = vmatpush.bf16.msra.mxu0 0
    %151 = vmatpush.bf16.msra.mxu0 0
    %152 = vmatpush.bf16.msra.mxu0 0
    %153 = vmatpush.bf16.msra.mxu0 0
    %154 = vmatpush.bf16.msra.mxu0 0
    %155 = vmatpush.bf16.msra.mxu0 0
    %156 = vmatpush.bf16.msra.mxu0 0
    %157 = vmatpush.bf16.msra.mxu0 %v128
    %158 = vmatmul.bf16.gmra.mxu0 %v121
    %v159 = vpop.f32.mrf.mxu0
    %v160 = vadd.f32 %v102, %v159
    %v161 = vpop.f32.mrf.mxu0
    %v162 = vadd.f32 %v102, %v161
    %163 = vdwg.mxu0
    %164 = vmatpush.bf16.msra.mxu0 0
    %165 = vmatpush.bf16.msra.mxu0 0
    %166 = vmatpush.bf16.msra.mxu0 0
    %167 = vmatpush.bf16.msra.mxu0 0
    %168 = vmatpush.bf16.msra.mxu0 0
    %169 = vmatpush.bf16.msra.mxu0 0
    %170 = vmatpush.bf16.msra.mxu0 0
    %171 = vmatpush.bf16.msra.mxu0 %v131
    %172 = vmatmul.bf16.gmra.mxu0 %v121
    %v173 = vpop.f32.mrf.mxu0
    %v174 = vadd.f32 %v103, %v173
    %v175 = vpop.f32.mrf.mxu0
    %v176 = vadd.f32 %v103, %v175
    %177 = vdwg.mxu0
    %178 = vmatpush.bf16.msra.mxu0 0
    %179 = vmatpush.bf16.msra.mxu0 0
    %180 = vmatpush.bf16.msra.mxu0 0
    %181 = vmatpush.bf16.msra.mxu0 0
    %182 = vmatpush.bf16.msra.mxu0 0
    %183 = vmatpush.bf16.msra.mxu0 0
    %184 = vmatpush.bf16.msra.mxu0 0
    %185 = vmatpush.bf16.msra.mxu0 %v134
    %186 = vmatmul.bf16.gmra.mxu0 %v121
    %v187 = vpop.f32.mrf.mxu0
    %v188 = vadd.f32 %v104, %v187
    %v189 = vpop.f32.mrf.mxu0
    %v190 = vadd.f32 %v104, %v189
    %191 = vdwg.mxu0
    %vm192 = vcmp.gt.f32.partialorder %v146, 0.0
    %vm193 = vcmp.gt.f32.partialorder %v160, 0.0
    %vm194 = vcmp.gt.f32.partialorder %v174, 0.0
    %vm195 = vcmp.gt.f32.partialorder %v188, 0.0
    %vm196 = vcmp.gt.f32.partialorder %v148, 0.0
    %vm197 = vcmp.gt.f32.partialorder %v162, 0.0
    %vm198 = vcmp.gt.f32.partialorder %v176, 0.0
    %vm199 = vcmp.gt.f32.partialorder %v190, 0.0
    %v200 = vmul.f32 %v146, 0.1
    %v201 = vmul.f32 %v160, 0.1
    %v202 = vmul.f32 %v174, 0.1
    %v203 = vmul.f32 %v188, 0.1
    %v204 = vmul.f32 %v148, 0.1
    %v205 = vmul.f32 %v162, 0.1
    %v206 = vmul.f32 %v176, 0.1
    %v207 = vmul.f32 %v190, 0.1
    %v208 = vsel %vm192, %v146, %v200
    %v209 = vsel %vm193, %v160, %v201
    %v210 = vsel %vm194, %v174, %v202
    %v211 = vsel %vm195, %v188, %v203
    %v212 = vsel %vm196, %v148, %v204
    %v213 = vsel %vm197, %v162, %v205
    %v214 = vsel %vm198, %v176, %v206
    %v215 = vsel %vm199, %v190, %v207
    %v216 = vpack.c.bf16 %v212, %v208
    %v217 = vpack.c.bf16 %v213, %v209
    %v218 = vpack.c.bf16 %v214, %v210
    %v219 = vpack.c.bf16 %v215, %v211
    %v220 = vld [vmem:[#allocation2] sm:$0xff]
    %v221 = vld [vmem:[#allocation2 + $0x8] sm:$0xf]
    %v222 = vld [vmem:[#allocation2 + $0xc] sm:$0xff]
    %v223 = vld [vmem:[#allocation2 + $0x14] sm:$0xf]
    %v224 = vld [vmem:[#allocation2 + $0x18] sm:$0xff]
    %v225 = vld [vmem:[#allocation2 + $0x20] sm:$0xf]
    %v226 = vld [vmem:[#allocation2 + $0x24] sm:$0xff]
    %v227 = vld [vmem:[#allocation2 + $0x2c] sm:$0xf]
    %v228 = vld [vmem:[#allocation2 + $0x30] sm:$0xff]
    %v229 = vld [vmem:[#allocation2 + $0x38] sm:$0xf]
    %v230 = vld [vmem:[#allocation2 + $0x3c] sm:$0xff]
    %v231 = vld [vmem:[#allocation2 + $0x44] sm:$0xf]
    %v232 = vld [vmem:[#allocation2 + $0x48] sm:$0xff]
    %v233 = vld [vmem:[#allocation2 + $0x50] sm:$0xf]
    %v234 = vld [vmem:[#allocation2 + $0x54] sm:$0xff]
    %v235 = vld [vmem:[#allocation2 + $0x5c] sm:$0xf]
    %v236 = vld [vmem:[#allocation2 + $0x60] sm:$0xff]
    %v237 = vld [vmem:[#allocation2 + $0x68] sm:$0xf]
    %v238 = vld [vmem:[#allocation2 + $0x6c] sm:$0xff]
    %v239 = vld [vmem:[#allocation2 + $0x74] sm:$0xf]
    %v240 = vld [vmem:[#allocation2 + $0x78] sm:$0xff]
    %v241 = vld [vmem:[#allocation2 + $0x80] sm:$0xf]
    %v242 = vld [vmem:[#allocation2 + $0x84] sm:$0xff]
    %v243 = vld [vmem:[#allocation2 + $0x8c] sm:$0xf]
    %v244 = vld [vmem:[#allocation2 + $0x90] sm:$0xff]
    %v245 = vld [vmem:[#allocation2 + $0x98] sm:$0xf]
    %v246 = vld [vmem:[#allocation2 + $0x9c] sm:$0xff]
    %v247 = vld [vmem:[#allocation2 + $0xa4] sm:$0xf]
    %v248 = vld [vmem:[#allocation2 + $0xa8] sm:$0xff]
    %v249 = vld [vmem:[#allocation2 + $0xb0] sm:$0xf]
    %v250 = vld [vmem:[#allocation2 + $0xb4] sm:$0xff]
    %v251 = vld [vmem:[#allocation2 + $0xbc] sm:$0xf]
    %v252 = vld [vmem:[#allocation2 + $0xc0] sm:$0xff]
    %v253 = vld [vmem:[#allocation2 + $0xc8] sm:$0xf]
    %v254 = vld [vmem:[#allocation2 + $0xcc] sm:$0xff]
    %v255 = vld [vmem:[#allocation2 + $0xd4] sm:$0xf]
    %v256 = vld [vmem:[#allocation2 + $0xd8] sm:$0xff]
    %v257 = vld [vmem:[#allocation2 + $0xe0] sm:$0xf]
    %v258 = vld [vmem:[#allocation2 + $0xe4] sm:$0xff]
    %v259 = vld [vmem:[#allocation2 + $0xec] sm:$0xf]
    %v260 = vld [vmem:[#allocation2 + $0xf0] sm:$0xff]
    %v261 = vld [vmem:[#allocation2 + $0xf8] sm:$0xf]
    %v262 = vld [vmem:[#allocation2 + $0xfc] sm:$0xff]
    %v263 = vld [vmem:[#allocation2 + $0x104] sm:$0xf]
    %v264 = vld [vmem:[#allocation2 + $0x108] sm:$0xff]
    %v265 = vld [vmem:[#allocation2 + $0x110] sm:$0xf]
    %v266 = vld [vmem:[#allocation2 + $0x114] sm:$0xff]
    %v267 = vld [vmem:[#allocation2 + $0x11c] sm:$0xf]
    %v268 = vld [vmem:[#allocation2 + $0x120] sm:$0xff]
    %v269 = vld [vmem:[#allocation2 + $0x128] sm:$0xf]
    %v270 = vld [vmem:[#allocation2 + $0x12c] sm:$0xff]
    %v271 = vld [vmem:[#allocation2 + $0x134] sm:$0xf]
    %v272 = vld [vmem:[#allocation2 + $0x138] sm:$0xff]
    %v273 = vld [vmem:[#allocation2 + $0x140] sm:$0xf]
    %v274 = vld [vmem:[#allocation2 + $0x144] sm:$0xff]
    %v275 = vld [vmem:[#allocation2 + $0x14c] sm:$0xf]
    %v276 = vld [vmem:[#allocation2 + $0x150] sm:$0xff]
    %v277 = vld [vmem:[#allocation2 + $0x158] sm:$0xf]
    %v278 = vld [vmem:[#allocation2 + $0x15c] sm:$0xff]
    %v279 = vld [vmem:[#allocation2 + $0x164] sm:$0xf]
    %v280 = vld [vmem:[#allocation2 + $0x168] sm:$0xff]
    %v281 = vld [vmem:[#allocation2 + $0x170] sm:$0xf]
    %v282 = vld [vmem:[#allocation2 + $0x174] sm:$0xff]
    %v283 = vld [vmem:[#allocation2 + $0x17c] sm:$0xf]
    %v284 = vld [vmem:[#allocation2 + $0x180] sm:$0xff]
    %v285 = vld [vmem:[#allocation2 + $0x188] sm:$0xf]
    %v286 = vld [vmem:[#allocation2 + $0x18c] sm:$0xff]
    %v287 = vld [vmem:[#allocation2 + $0x194] sm:$0xf]
    %v288 = vld [vmem:[#allocation2 + $0x198] sm:$0xff]
    %v289 = vld [vmem:[#allocation2 + $0x1a0] sm:$0xf]
    %v290 = vld [vmem:[#allocation2 + $0x1a4] sm:$0xff]
    %v291 = vld [vmem:[#allocation2 + $0x1ac] sm:$0xf]
    %v292 = vld [vmem:[#allocation2 + $0x1b0] sm:$0xff]
    %v293 = vld [vmem:[#allocation2 + $0x1b8] sm:$0xf]
    %v294 = vld [vmem:[#allocation2 + $0x1bc] sm:$0xff]
    %v295 = vld [vmem:[#allocation2 + $0x1c4] sm:$0xf]
    %v296 = vld [vmem:[#allocation2 + $0x1c8] sm:$0xff]
    %v297 = vld [vmem:[#allocation2 + $0x1d0] sm:$0xf]
    %v298 = vld [vmem:[#allocation2 + $0x1d4] sm:$0xff]
    %v299 = vld [vmem:[#allocation2 + $0x1dc] sm:$0xf]
    %v300 = vld [vmem:[#allocation2 + $0x1e0] sm:$0xff]
    %v301 = vld [vmem:[#allocation2 + $0x1e8] sm:$0xf]
    %v302 = vld [vmem:[#allocation2 + $0x1ec] sm:$0xff]
    %v303 = vld [vmem:[#allocation2 + $0x1f4] sm:$0xf]
    %v304 = vld [vmem:[#allocation2 + $0x1f8] sm:$0xff]
    %v305 = vld [vmem:[#allocation2 + $0x200] sm:$0xf]
    %v306 = vld [vmem:[#allocation2 + $0x204] sm:$0xff]
    %v307 = vld [vmem:[#allocation2 + $0x20c] sm:$0xf]
    %v308 = vld [vmem:[#allocation2 + $0x210] sm:$0xff]
    %v309 = vld [vmem:[#allocation2 + $0x218] sm:$0xf]
    %v310 = vld [vmem:[#allocation2 + $0x21c] sm:$0xff]
    %v311 = vld [vmem:[#allocation2 + $0x224] sm:$0xf]
    %v312 = vld [vmem:[#allocation2 + $0x228] sm:$0xff]
    %v313 = vld [vmem:[#allocation2 + $0x230] sm:$0xf]
    %v314 = vld [vmem:[#allocation2 + $0x234] sm:$0xff]
    %v315 = vld [vmem:[#allocation2 + $0x23c] sm:$0xf]
    %v316 = vld [vmem:[#allocation2 + $0x240] sm:$0xff]
    %v317 = vld [vmem:[#allocation2 + $0x248] sm:$0xf]
    %v318 = vld [vmem:[#allocation2 + $0x24c] sm:$0xff]
    %v319 = vld [vmem:[#allocation2 + $0x254] sm:$0xf]
    %v320 = vld [vmem:[#allocation4] sm:$0x7]
    %v322 = vperm.slane %v320, 0
    %v323 = vperm.slane %v320, 1
    %v324 = vperm.slane %v320, 2
    %v428 = vunpack.c.l.b16 %v220
    %v429 = vunpack.c.h.b16 %v220
    %v430 = vunpack.c.l.b16 %v221
    %v431 = vunpack.c.l.b16 %v222
    %v432 = vunpack.c.h.b16 %v222
    %v433 = vunpack.c.l.b16 %v223
    %v434 = vunpack.c.l.b16 %v224
    %v435 = vunpack.c.h.b16 %v224
    %v436 = vunpack.c.l.b16 %v225
    %v437 = vunpack.c.l.b16 %v226
    %v438 = vunpack.c.h.b16 %v226
    %v439 = vunpack.c.l.b16 %v227
    %v440 = vunpack.c.l.b16 %v228
    %v441 = vunpack.c.h.b16 %v228
    %v442 = vunpack.c.l.b16 %v229
    %v443 = vunpack.c.l.b16 %v230
    %v444 = vunpack.c.h.b16 %v230
    %v445 = vunpack.c.l.b16 %v231
    %v446 = vunpack.c.l.b16 %v232
    %v447 = vunpack.c.h.b16 %v232
    %v448 = vunpack.c.l.b16 %v233
    %v449 = vunpack.c.l.b16 %v234
    %v450 = vunpack.c.h.b16 %v234
    %v451 = vunpack.c.l.b16 %v235
    %v452 = vunpack.c.l.b16 %v236
    %v453 = vunpack.c.h.b16 %v236
    %v454 = vunpack.c.l.b16 %v237
    %v455 = vunpack.c.l.b16 %v238
    %v456 = vunpack.c.h.b16 %v238
    %v457 = vunpack.c.l.b16 %v239
    %v458 = vunpack.c.l.b16 %v240
    %v459 = vunpack.c.h.b16 %v240
    %v460 = vunpack.c.l.b16 %v241
    %v461 = vunpack.c.l.b16 %v242
    %v462 = vunpack.c.h.b16 %v242
    %v463 = vunpack.c.l.b16 %v243
    %v464 = vunpack.c.l.b16 %v244
    %v465 = vunpack.c.h.b16 %v244
    %v466 = vunpack.c.l.b16 %v245
    %v467 = vunpack.c.l.b16 %v246
    %v468 = vunpack.c.h.b16 %v246
    %v469 = vunpack.c.l.b16 %v247
    %v470 = vunpack.c.l.b16 %v248
    %v471 = vunpack.c.h.b16 %v248
    %v472 = vunpack.c.l.b16 %v249
    %v473 = vunpack.c.l.b16 %v250
    %v474 = vunpack.c.h.b16 %v250
    %v475 = vunpack.c.l.b16 %v251
    %v476 = vunpack.c.l.b16 %v252
    %v477 = vunpack.c.h.b16 %v252
    %v478 = vunpack.c.l.b16 %v253
    %v479 = vunpack.c.l.b16 %v254
    %v480 = vunpack.c.h.b16 %v254
    %v481 = vunpack.c.l.b16 %v255
    %v482 = vunpack.c.l.b16 %v256
    %v483 = vunpack.c.h.b16 %v256
    %v484 = vunpack.c.l.b16 %v257
    %v485 = vunpack.c.l.b16 %v258
    %v486 = vunpack.c.h.b16 %v258
    %v487 = vunpack.c.l.b16 %v259
    %v488 = vunpack.c.l.b16 %v260
    %v489 = vunpack.c.h.b16 %v260
    %v490 = vunpack.c.l.b16 %v261
    %v491 = vunpack.c.l.b16 %v262
    %v492 = vunpack.c.h.b16 %v262
    %v493 = vunpack.c.l.b16 %v263
    %v494 = vunpack.c.l.b16 %v264
    %v495 = vunpack.c.h.b16 %v264
    %v496 = vunpack.c.l.b16 %v265
    %v497 = vunpack.c.l.b16 %v266
    %v498 = vunpack.c.h.b16 %v266
    %v499 = vunpack.c.l.b16 %v267
    %v500 = vunpack.c.l.b16 %v268
    %v501 = vunpack.c.h.b16 %v268
    %v502 = vunpack.c.l.b16 %v269
    %v503 = vunpack.c.l.b16 %v270
    %v504 = vunpack.c.h.b16 %v270
    %v505 = vunpack.c.l.b16 %v271
    %v506 = vunpack.c.l.b16 %v272
    %v507 = vunpack.c.h.b16 %v272
    %v508 = vunpack.c.l.b16 %v273
    %v509 = vunpack.c.l.b16 %v274
    %v510 = vunpack.c.h.b16 %v274
    %v511 = vunpack.c.l.b16 %v275
    %v512 = vunpack.c.l.b16 %v276
    %v513 = vunpack.c.h.b16 %v276
    %v514 = vunpack.c.l.b16 %v277
    %v515 = vunpack.c.l.b16 %v278
    %v516 = vunpack.c.h.b16 %v278
    %v517 = vunpack.c.l.b16 %v279
    %v518 = vunpack.c.l.b16 %v280
    %v519 = vunpack.c.h.b16 %v280
    %v520 = vunpack.c.l.b16 %v281
    %v521 = vunpack.c.l.b16 %v282
    %v522 = vunpack.c.h.b16 %v282
    %v523 = vunpack.c.l.b16 %v283
    %v524 = vunpack.c.l.b16 %v284
    %v525 = vunpack.c.h.b16 %v284
    %v526 = vunpack.c.l.b16 %v285
    %v527 = vunpack.c.l.b16 %v286
    %v528 = vunpack.c.h.b16 %v286
    %v529 = vunpack.c.l.b16 %v287
    %v530 = vunpack.c.l.b16 %v288
    %v531 = vunpack.c.h.b16 %v288
    %v532 = vunpack.c.l.b16 %v289
    %v533 = vunpack.c.l.b16 %v290
    %v534 = vunpack.c.h.b16 %v290
    %v535 = vunpack.c.l.b16 %v291
    %v536 = vunpack.c.l.b16 %v292
    %v537 = vunpack.c.h.b16 %v292
    %v538 = vunpack.c.l.b16 %v293
    %v539 = vunpack.c.l.b16 %v294
    %v540 = vunpack.c.h.b16 %v294
    %v541 = vunpack.c.l.b16 %v295
    %v542 = vunpack.c.l.b16 %v296
    %v543 = vunpack.c.h.b16 %v296
    %v544 = vunpack.c.l.b16 %v297
    %v545 = vunpack.c.l.b16 %v298
    %v546 = vunpack.c.h.b16 %v298
    %v547 = vunpack.c.l.b16 %v299
    %v548 = vunpack.c.l.b16 %v300
    %v549 = vunpack.c.h.b16 %v300
    %v550 = vunpack.c.l.b16 %v301
    %v551 = vunpack.c.l.b16 %v302
    %v552 = vunpack.c.h.b16 %v302
    %v553 = vunpack.c.l.b16 %v303
    %v554 = vunpack.c.l.b16 %v304
    %v555 = vunpack.c.h.b16 %v304
    %v556 = vunpack.c.l.b16 %v305
    %v557 = vunpack.c.l.b16 %v306
    %v558 = vunpack.c.h.b16 %v306
    %v559 = vunpack.c.l.b16 %v307
    %v560 = vunpack.c.l.b16 %v308
    %v561 = vunpack.c.h.b16 %v308
    %v562 = vunpack.c.l.b16 %v309
    %v563 = vunpack.c.l.b16 %v310
    %v564 = vunpack.c.h.b16 %v310
    %v565 = vunpack.c.l.b16 %v311
    %v566 = vunpack.c.l.b16 %v312
    %v567 = vunpack.c.h.b16 %v312
    %v568 = vunpack.c.l.b16 %v313
    %v569 = vunpack.c.l.b16 %v314
    %v570 = vunpack.c.h.b16 %v314
    %v571 = vunpack.c.l.b16 %v315
    %v572 = vunpack.c.l.b16 %v316
    %v573 = vunpack.c.h.b16 %v316
    %v574 = vunpack.c.l.b16 %v317
    %v575 = vunpack.c.l.b16 %v318
    %v576 = vunpack.c.h.b16 %v318
    %v577 = vunpack.c.l.b16 %v319
    %v578 = vpack.c.b16 %v431, %v428
    %v579 = vpack.c.b16 %v432, %v429
    %v580 = vpack.c.b16 %v433, %v430
    %v581 = vpack.c.b16 %v437, %v434
    %v582 = vpack.c.b16 %v438, %v435
    %v583 = vpack.c.b16 %v439, %v436
    %v584 = vpack.c.b16 %v443, %v440
    %v585 = vpack.c.b16 %v444, %v441
    %v586 = vpack.c.b16 %v445, %v442
    %v587 = vpack.c.b16 %v449, %v446
    %v588 = vpack.c.b16 %v450, %v447
    %v589 = vpack.c.b16 %v451, %v448
    %v590 = vpack.c.b16 %v455, %v452
    %v591 = vpack.c.b16 %v456, %v453
    %v592 = vpack.c.b16 %v457, %v454
    %v593 = vpack.c.b16 %v461, %v458
    %v594 = vpack.c.b16 %v462, %v459
    %v595 = vpack.c.b16 %v463, %v460
    %v596 = vpack.c.b16 %v467, %v464
    %v597 = vpack.c.b16 %v468, %v465
    %v598 = vpack.c.b16 %v469, %v466
    %v599 = vpack.c.b16 %v473, %v470
    %v600 = vpack.c.b16 %v474, %v471
    %v601 = vpack.c.b16 %v475, %v472
    %v602 = vpack.c.b16 %v479, %v476
    %v603 = vpack.c.b16 %v480, %v477
    %v604 = vpack.c.b16 %v481, %v478
    %v605 = vpack.c.b16 %v485, %v482
    %v606 = vpack.c.b16 %v486, %v483
    %v607 = vpack.c.b16 %v487, %v484
    %v608 = vpack.c.b16 %v491, %v488
    %v609 = vpack.c.b16 %v492, %v489
    %v610 = vpack.c.b16 %v493, %v490
    %v611 = vpack.c.b16 %v497, %v494
    %v612 = vpack.c.b16 %v498, %v495
    %v613 = vpack.c.b16 %v499, %v496
    %v614 = vpack.c.b16 %v503, %v500
    %v615 = vpack.c.b16 %v504, %v501
    %v616 = vpack.c.b16 %v505, %v502
    %v617 = vpack.c.b16 %v509, %v506
    %v618 = vpack.c.b16 %v510, %v507
    %v619 = vpack.c.b16 %v511, %v508
    %v620 = vpack.c.b16 %v515, %v512
    %v621 = vpack.c.b16 %v516, %v513
    %v622 = vpack.c.b16 %v517, %v514
    %v623 = vpack.c.b16 %v521, %v518
    %v624 = vpack.c.b16 %v522, %v519
    %v625 = vpack.c.b16 %v523, %v520
    %v626 = vpack.c.b16 %v527, %v524
    %v627 = vpack.c.b16 %v528, %v525
    %v628 = vpack.c.b16 %v529, %v526
    %v629 = vpack.c.b16 %v533, %v530
    %v630 = vpack.c.b16 %v534, %v531
    %v631 = vpack.c.b16 %v535, %v532
    %v632 = vpack.c.b16 %v539, %v536
    %v633 = vpack.c.b16 %v540, %v537
    %v634 = vpack.c.b16 %v541, %v538
    %v635 = vpack.c.b16 %v545, %v542
    %v636 = vpack.c.b16 %v546, %v543
    %v637 = vpack.c.b16 %v547, %v544
    %v638 = vpack.c.b16 %v551, %v548
    %v639 = vpack.c.b16 %v552, %v549
    %v640 = vpack.c.b16 %v553, %v550
    %v641 = vpack.c.b16 %v557, %v554
    %v642 = vpack.c.b16 %v558, %v555
    %v643 = vpack.c.b16 %v559, %v556
    %v644 = vpack.c.b16 %v563, %v560
    %v645 = vpack.c.b16 %v564, %v561
    %v646 = vpack.c.b16 %v565, %v562
    %v647 = vpack.c.b16 %v569, %v566
    %v648 = vpack.c.b16 %v570, %v567
    %v649 = vpack.c.b16 %v571, %v568
    %v650 = vpack.c.b16 %v575, %v572
    %v651 = vpack.c.b16 %v576, %v573
    %v652 = vpack.c.b16 %v577, %v574
    %vm728 = vcmask 130048
    %v730 = vsel %vm728, %v219, 0
    %732 = vmatpush.bf16.msra.mxu0 %v599
    %733 = vmatpush.bf16.msra.mxu0 %v596
    %734 = vmatpush.bf16.msra.mxu0 %v593
    %735 = vmatpush.bf16.msra.mxu0 %v590
    %736 = vmatpush.bf16.msra.mxu0 %v587
    %737 = vmatpush.bf16.msra.mxu0 %v584
    %738 = vmatpush.bf16.msra.mxu0 %v581
    %739 = vmatpush.bf16.msra.mxu0 %v578
    %740 = vmatmul.bf16.gmra.mxu0 %v216
    %v741 = vpop.f32.mrf.mxu0
    %v742 = vadd.f32 %v322, %v741
    %v743 = vpop.f32.mrf.mxu0
    %v744 = vadd.f32 %v322, %v743
    %745 = vdwg.mxu0
    %746 = vmatpush.bf16.msra.mxu0 %v623
    %747 = vmatpush.bf16.msra.mxu0 %v620
    %748 = vmatpush.bf16.msra.mxu0 %v617
    %749 = vmatpush.bf16.msra.mxu0 %v614
    %750 = vmatpush.bf16.msra.mxu0 %v611
    %751 = vmatpush.bf16.msra.mxu0 %v608
    %752 = vmatpush.bf16.msra.mxu0 %v605
    %753 = vmatpush.bf16.msra.mxu0 %v602
    %754 = vmatmul.bf16.gmra.mxu0 %v217
    %v755 = vpop.f32.mrf.mxu0
    %v756 = vadd.f32 %v742, %v755
    %v757 = vpop.f32.mrf.mxu0
    %v758 = vadd.f32 %v744, %v757
    %759 = vdwg.mxu0
    %760 = vmatpush.bf16.msra.mxu0 %v647
    %761 = vmatpush.bf16.msra.mxu0 %v644
    %762 = vmatpush.bf16.msra.mxu0 %v641
    %763 = vmatpush.bf16.msra.mxu0 %v638
    %764 = vmatpush.bf16.msra.mxu0 %v635
    %765 = vmatpush.bf16.msra.mxu0 %v632
    %766 = vmatpush.bf16.msra.mxu0 %v629
    %767 = vmatpush.bf16.msra.mxu0 %v626
    %768 = vmatmul.bf16.gmra.mxu0 %v218
    %v769 = vpop.f32.mrf.mxu0
    %v770 = vadd.f32 %v756, %v769
    %v771 = vpop.f32.mrf.mxu0
    %v772 = vadd.f32 %v758, %v771
    %773 = vdwg.mxu0
    %774 = vmatpush.bf16.msra.mxu0 0
    %775 = vmatpush.bf16.msra.mxu0 0
    %776 = vmatpush.bf16.msra.mxu0 0
    %777 = vmatpush.bf16.msra.mxu0 0
    %778 = vmatpush.bf16.msra.mxu0 0
    %779 = vmatpush.bf16.msra.mxu0 0
    %780 = vmatpush.bf16.msra.mxu0 0
    %781 = vmatpush.bf16.msra.mxu0 %v650
    %782 = vmatmul.bf16.gmra.mxu0 %v730
    %v783 = vpop.f32.mrf.mxu0
    %v784 = vadd.f32 %v770, %v783
    %v785 = vpop.f32.mrf.mxu0
    %v786 = vadd.f32 %v772, %v785
    %787 = vdwg.mxu0
    %788 = vmatpush.bf16.msra.mxu0 %v600
    %789 = vmatpush.bf16.msra.mxu0 %v597
    %790 = vmatpush.bf16.msra.mxu0 %v594
    %791 = vmatpush.bf16.msra.mxu0 %v591
    %792 = vmatpush.bf16.msra.mxu0 %v588
    %793 = vmatpush.bf16.msra.mxu0 %v585
    %794 = vmatpush.bf16.msra.mxu0 %v582
    %795 = vmatpush.bf16.msra.mxu0 %v579
    %796 = vmatmul.bf16.gmra.mxu0 %v216
    %v797 = vpop.f32.mrf.mxu0
    %v798 = vadd.f32 %v323, %v797
    %v799 = vpop.f32.mrf.mxu0
    %v800 = vadd.f32 %v323, %v799
    %801 = vdwg.mxu0
    %802 = vmatpush.bf16.msra.mxu0 %v624
    %803 = vmatpush.bf16.msra.mxu0 %v621
    %804 = vmatpush.bf16.msra.mxu0 %v618
    %805 = vmatpush.bf16.msra.mxu0 %v615
    %806 = vmatpush.bf16.msra.mxu0 %v612
    %807 = vmatpush.bf16.msra.mxu0 %v609
    %808 = vmatpush.bf16.msra.mxu0 %v606
    %809 = vmatpush.bf16.msra.mxu0 %v603
    %810 = vmatmul.bf16.gmra.mxu0 %v217
    %v811 = vpop.f32.mrf.mxu0
    %v812 = vadd.f32 %v798, %v811
    %v813 = vpop.f32.mrf.mxu0
    %v814 = vadd.f32 %v800, %v813
    %815 = vdwg.mxu0
    %816 = vmatpush.bf16.msra.mxu0 %v648
    %817 = vmatpush.bf16.msra.mxu0 %v645
    %818 = vmatpush.bf16.msra.mxu0 %v642
    %819 = vmatpush.bf16.msra.mxu0 %v639
    %820 = vmatpush.bf16.msra.mxu0 %v636
    %821 = vmatpush.bf16.msra.mxu0 %v633
    %822 = vmatpush.bf16.msra.mxu0 %v630
    %823 = vmatpush.bf16.msra.mxu0 %v627
    %824 = vmatmul.bf16.gmra.mxu0 %v218
    %v825 = vpop.f32.mrf.mxu0
    %v826 = vadd.f32 %v812, %v825
    %v827 = vpop.f32.mrf.mxu0
    %v828 = vadd.f32 %v814, %v827
    %829 = vdwg.mxu0
    %830 = vmatpush.bf16.msra.mxu0 0
    %831 = vmatpush.bf16.msra.mxu0 0
    %832 = vmatpush.bf16.msra.mxu0 0
    %833 = vmatpush.bf16.msra.mxu0 0
    %834 = vmatpush.bf16.msra.mxu0 0
    %835 = vmatpush.bf16.msra.mxu0 0
    %836 = vmatpush.bf16.msra.mxu0 0
    %837 = vmatpush.bf16.msra.mxu0 %v651
    %838 = vmatmul.bf16.gmra.mxu0 %v730
    %v839 = vpop.f32.mrf.mxu0
    %v840 = vadd.f32 %v826, %v839
    %v841 = vpop.f32.mrf.mxu0
    %v842 = vadd.f32 %v828, %v841
    %843 = vdwg.mxu0
    %844 = vmatpush.bf16.msra.mxu0 %v601
    %845 = vmatpush.bf16.msra.mxu0 %v598
    %846 = vmatpush.bf16.msra.mxu0 %v595
    %847 = vmatpush.bf16.msra.mxu0 %v592
    %848 = vmatpush.bf16.msra.mxu0 %v589
    %849 = vmatpush.bf16.msra.mxu0 %v586
    %850 = vmatpush.bf16.msra.mxu0 %v583
    %851 = vmatpush.bf16.msra.mxu0 %v580
    %852 = vmatmul.bf16.gmra.mxu0 %v216
    %v853 = vpop.f32.mrf.mxu0
    %v854 = vadd.f32 %v324, %v853
    %v855 = vpop.f32.mrf.mxu0
    %v856 = vadd.f32 %v324, %v855
    %857 = vdwg.mxu0
    %858 = vmatpush.bf16.msra.mxu0 %v625
    %859 = vmatpush.bf16.msra.mxu0 %v622
    %860 = vmatpush.bf16.msra.mxu0 %v619
    %861 = vmatpush.bf16.msra.mxu0 %v616
    %862 = vmatpush.bf16.msra.mxu0 %v613
    %863 = vmatpush.bf16.msra.mxu0 %v610
    %864 = vmatpush.bf16.msra.mxu0 %v607
    %865 = vmatpush.bf16.msra.mxu0 %v604
    %866 = vmatmul.bf16.gmra.mxu0 %v217
    %v867 = vpop.f32.mrf.mxu0
    %v868 = vadd.f32 %v854, %v867
    %v869 = vpop.f32.mrf.mxu0
    %v870 = vadd.f32 %v856, %v869
    %871 = vdwg.mxu0
    %872 = vmatpush.bf16.msra.mxu0 %v649
    %873 = vmatpush.bf16.msra.mxu0 %v646
    %874 = vmatpush.bf16.msra.mxu0 %v643
    %875 = vmatpush.bf16.msra.mxu0 %v640
    %876 = vmatpush.bf16.msra.mxu0 %v637
    %877 = vmatpush.bf16.msra.mxu0 %v634
    %878 = vmatpush.bf16.msra.mxu0 %v631
    %879 = vmatpush.bf16.msra.mxu0 %v628
    %880 = vmatmul.bf16.gmra.mxu0 %v218
    %v881 = vpop.f32.mrf.mxu0
    %v882 = vadd.f32 %v868, %v881
    %v883 = vpop.f32.mrf.mxu0
    %v884 = vadd.f32 %v870, %v883
    %885 = vdwg.mxu0
    %886 = vmatpush.bf16.msra.mxu0 0
    %887 = vmatpush.bf16.msra.mxu0 0
    %888 = vmatpush.bf16.msra.mxu0 0
    %889 = vmatpush.bf16.msra.mxu0 0
    %890 = vmatpush.bf16.msra.mxu0 0
    %891 = vmatpush.bf16.msra.mxu0 0
    %892 = vmatpush.bf16.msra.mxu0 0
    %893 = vmatpush.bf16.msra.mxu0 %v652
    %894 = vmatmul.bf16.gmra.mxu0 %v730
    %v895 = vpop.f32.mrf.mxu0
    %v896 = vadd.f32 %v882, %v895
    %v897 = vpop.f32.mrf.mxu0
    %v898 = vadd.f32 %v884, %v897
    %899 = vdwg.mxu0
    %vm900 = vcmp.gt.f32.partialorder %v784, 0.0
    %vm901 = vcmp.gt.f32.partialorder %v840, 0.0
    %vm902 = vcmp.gt.f32.partialorder %v896, 0.0
    %vm903 = vcmp.gt.f32.partialorder %v786, 0.0
    %vm904 = vcmp.gt.f32.partialorder %v842, 0.0
    %vm905 = vcmp.gt.f32.partialorder %v898, 0.0
    %v906 = vmul.f32 %v784, 0.1
    %v907 = vmul.f32 %v840, 0.1
    %v908 = vmul.f32 %v896, 0.1
    %v909 = vmul.f32 %v786, 0.1
    %v910 = vmul.f32 %v842, 0.1
    %v911 = vmul.f32 %v898, 0.1
    %v912 = vsel %vm900, %v784, %v906
    %v913 = vsel %vm901, %v840, %v907
    %v914 = vsel %vm902, %v896, %v908
    %v915 = vsel %vm903, %v786, %v909
    %v916 = vsel %vm904, %v842, %v910
    %v917 = vsel %vm905, %v898, %v911
    %v918 = vpack.c.bf16 %v915, %v912
    %v919 = vpack.c.bf16 %v916, %v913
    %v920 = vpack.c.bf16 %v917, %v914
    %v921 = vld [vmem:[#allocation6] sm:$0xff]
    %v922 = vld [vmem:[#allocation6 + $0x8] sm:$0xff]
    %v923 = vld [vmem:[#allocation6 + $0x10] sm:$0xff]
    %v924 = vld [vmem:[#allocation6 + $0x18] sm:$0xff]
    %v925 = vld [vmem:[#allocation6 + $0x20] sm:$0xff]
    %v926 = vld [vmem:[#allocation6 + $0x28] sm:$0xff]
    %v927 = vld [vmem:[#allocation6 + $0x30] sm:$0xff]
    %v928 = vld [vmem:[#allocation6 + $0x38] sm:$0xff]
    %v929 = vld [vmem:[#allocation6 + $0x40] sm:$0xff]
    %v930 = vld [vmem:[#allocation6 + $0x48] sm:$0xff]
    %v931 = vld [vmem:[#allocation6 + $0x50] sm:$0xff]
    %v932 = vld [vmem:[#allocation6 + $0x58] sm:$0xff]
    %v933 = vld [vmem:[#allocation6 + $0x60] sm:$0xff]
    %v934 = vld [vmem:[#allocation6 + $0x68] sm:$0xff]
    %v935 = vld [vmem:[#allocation6 + $0x70] sm:$0xff]
    %v936 = vld [vmem:[#allocation6 + $0x78] sm:$0xff]
    %v937 = vld [vmem:[#allocation6 + $0x80] sm:$0xff]
    %v938 = vld [vmem:[#allocation6 + $0x88] sm:$0xff]
    %v939 = vld [vmem:[#allocation6 + $0x90] sm:$0xff]
    %v940 = vld [vmem:[#allocation6 + $0x98] sm:$0xff]
    %v941 = vld [vmem:[#allocation6 + $0xa0] sm:$0xff]
    %v942 = vld [vmem:[#allocation6 + $0xa8] sm:$0xff]
    %v943 = vld [vmem:[#allocation6 + $0xb0] sm:$0xff]
    %v944 = vld [vmem:[#allocation6 + $0xb8] sm:$0xff]
    %v945 = vld [vmem:[#allocation6 + $0xc0] sm:$0xff]
    %v946 = vld [vmem:[#allocation6 + $0xc8] sm:$0xff]
    %v947 = vld [vmem:[#allocation6 + $0xd0] sm:$0xff]
    %v948 = vld [vmem:[#allocation6 + $0xd8] sm:$0xff]
    %v949 = vld [vmem:[#allocation6 + $0xe0] sm:$0xff]
    %v950 = vld [vmem:[#allocation6 + $0xe8] sm:$0xff]
    %v951 = vld [vmem:[#allocation6 + $0xf0] sm:$0xff]
    %v952 = vld [vmem:[#allocation6 + $0xf8] sm:$0xff]
    %v953 = vld [vmem:[#allocation6 + $0x100] sm:$0xff]
    %v954 = vld [vmem:[#allocation6 + $0x108] sm:$0xff]
    %v955 = vld [vmem:[#allocation6 + $0x110] sm:$0xff]
    %v956 = vld [vmem:[#allocation6 + $0x118] sm:$0xff]
    %v957 = vld [vmem:[#allocation6 + $0x120] sm:$0xff]
    %v958 = vld [vmem:[#allocation6 + $0x128] sm:$0xff]
    %v959 = vld [vmem:[%s6] sm:$0x3]
    %v961 = vperm.slane %v959, 0
    %v962 = vperm.slane %v959, 1
    %v1003 = vunpack.c.l.b16 %v921
    %v1004 = vunpack.c.h.b16 %v921
    %v1005 = vunpack.c.l.b16 %v922
    %v1006 = vunpack.c.h.b16 %v922
    %v1007 = vunpack.c.l.b16 %v923
    %v1008 = vunpack.c.h.b16 %v923
    %v1009 = vunpack.c.l.b16 %v924
    %v1010 = vunpack.c.h.b16 %v924
    %v1011 = vunpack.c.l.b16 %v925
    %v1012 = vunpack.c.h.b16 %v925
    %v1013 = vunpack.c.l.b16 %v926
    %v1014 = vunpack.c.h.b16 %v926
    %v1015 = vunpack.c.l.b16 %v927
    %v1016 = vunpack.c.h.b16 %v927
    %v1017 = vunpack.c.l.b16 %v928
    %v1018 = vunpack.c.h.b16 %v928
    %v1019 = vunpack.c.l.b16 %v929
    %v1020 = vunpack.c.h.b16 %v929
    %v1021 = vunpack.c.l.b16 %v930
    %v1022 = vunpack.c.h.b16 %v930
    %v1023 = vunpack.c.l.b16 %v931
    %v1024 = vunpack.c.h.b16 %v931
    %v1025 = vunpack.c.l.b16 %v932
    %v1026 = vunpack.c.h.b16 %v932
    %v1027 = vunpack.c.l.b16 %v933
    %v1028 = vunpack.c.h.b16 %v933
    %v1029 = vunpack.c.l.b16 %v934
    %v1030 = vunpack.c.h.b16 %v934
    %v1031 = vunpack.c.l.b16 %v935
    %v1032 = vunpack.c.h.b16 %v935
    %v1033 = vunpack.c.l.b16 %v936
    %v1034 = vunpack.c.h.b16 %v936
    %v1035 = vunpack.c.l.b16 %v937
    %v1036 = vunpack.c.h.b16 %v937
    %v1037 = vunpack.c.l.b16 %v938
    %v1038 = vunpack.c.h.b16 %v938
    %v1039 = vunpack.c.l.b16 %v939
    %v1040 = vunpack.c.h.b16 %v939
    %v1041 = vunpack.c.l.b16 %v940
    %v1042 = vunpack.c.h.b16 %v940
    %v1043 = vunpack.c.l.b16 %v941
    %v1044 = vunpack.c.h.b16 %v941
    %v1045 = vunpack.c.l.b16 %v942
    %v1046 = vunpack.c.h.b16 %v942
    %v1047 = vunpack.c.l.b16 %v943
    %v1048 = vunpack.c.h.b16 %v943
    %v1049 = vunpack.c.l.b16 %v944
    %v1050 = vunpack.c.h.b16 %v944
    %v1051 = vunpack.c.l.b16 %v945
    %v1052 = vunpack.c.h.b16 %v945
    %v1053 = vunpack.c.l.b16 %v946
    %v1054 = vunpack.c.h.b16 %v946
    %v1055 = vunpack.c.l.b16 %v947
    %v1056 = vunpack.c.h.b16 %v947
    %v1057 = vunpack.c.l.b16 %v948
    %v1058 = vunpack.c.h.b16 %v948
    %v1059 = vunpack.c.l.b16 %v949
    %v1060 = vunpack.c.h.b16 %v949
    %v1061 = vunpack.c.l.b16 %v950
    %v1062 = vunpack.c.h.b16 %v950
    %v1063 = vunpack.c.l.b16 %v951
    %v1064 = vunpack.c.h.b16 %v951
    %v1065 = vunpack.c.l.b16 %v952
    %v1066 = vunpack.c.h.b16 %v952
    %v1067 = vunpack.c.l.b16 %v953
    %v1068 = vunpack.c.h.b16 %v953
    %v1069 = vunpack.c.l.b16 %v954
    %v1070 = vunpack.c.h.b16 %v954
    %v1071 = vunpack.c.l.b16 %v955
    %v1072 = vunpack.c.h.b16 %v955
    %v1073 = vunpack.c.l.b16 %v956
    %v1074 = vunpack.c.h.b16 %v956
    %v1075 = vunpack.c.l.b16 %v957
    %v1076 = vunpack.c.h.b16 %v957
    %v1077 = vunpack.c.l.b16 %v958
    %v1078 = vunpack.c.h.b16 %v958
    %v1079 = vpack.c.b16 %v1005, %v1003
    %v1080 = vpack.c.b16 %v1006, %v1004
    %v1081 = vpack.c.b16 %v1009, %v1007
    %v1082 = vpack.c.b16 %v1010, %v1008
    %v1083 = vpack.c.b16 %v1013, %v1011
    %v1084 = vpack.c.b16 %v1014, %v1012
    %v1085 = vpack.c.b16 %v1017, %v1015
    %v1086 = vpack.c.b16 %v1018, %v1016
    %v1087 = vpack.c.b16 %v1021, %v1019
    %v1088 = vpack.c.b16 %v1022, %v1020
    %v1089 = vpack.c.b16 %v1025, %v1023
    %v1090 = vpack.c.b16 %v1026, %v1024
    %v1091 = vpack.c.b16 %v1029, %v1027
    %v1092 = vpack.c.b16 %v1030, %v1028
    %v1093 = vpack.c.b16 %v1033, %v1031
    %v1094 = vpack.c.b16 %v1034, %v1032
    %v1095 = vpack.c.b16 %v1037, %v1035
    %v1096 = vpack.c.b16 %v1038, %v1036
    %v1097 = vpack.c.b16 %v1041, %v1039
    %v1098 = vpack.c.b16 %v1042, %v1040
    %v1099 = vpack.c.b16 %v1045, %v1043
    %v1100 = vpack.c.b16 %v1046, %v1044
    %v1101 = vpack.c.b16 %v1049, %v1047
    %v1102 = vpack.c.b16 %v1050, %v1048
    %v1103 = vpack.c.b16 %v1053, %v1051
    %v1104 = vpack.c.b16 %v1054, %v1052
    %v1105 = vpack.c.b16 %v1057, %v1055
    %v1106 = vpack.c.b16 %v1058, %v1056
    %v1107 = vpack.c.b16 %v1061, %v1059
    %v1108 = vpack.c.b16 %v1062, %v1060
    %v1109 = vpack.c.b16 %v1065, %v1063
    %v1110 = vpack.c.b16 %v1066, %v1064
    %v1111 = vpack.c.b16 %v1069, %v1067
    %v1112 = vpack.c.b16 %v1070, %v1068
    %v1113 = vpack.c.b16 %v1073, %v1071
    %v1114 = vpack.c.b16 %v1074, %v1072
    %v1115 = vpack.c.b16 %v1077, %v1075
    %v1116 = vpack.c.b16 %v1078, %v1076
    %vm1155 = vcmask 392192
    %v1157 = vsel %vm1155, %v920, 0
    %1159 = vmatpush.bf16.msra.mxu0 %v1093
    %1160 = vmatpush.bf16.msra.mxu0 %v1091
    %1161 = vmatpush.bf16.msra.mxu0 %v1089
    %1162 = vmatpush.bf16.msra.mxu0 %v1087
    %1163 = vmatpush.bf16.msra.mxu0 %v1085
    %1164 = vmatpush.bf16.msra.mxu0 %v1083
    %1165 = vmatpush.bf16.msra.mxu0 %v1081
    %1166 = vmatpush.bf16.msra.mxu0 %v1079
    %1167 = vmatmul.bf16.gmra.mxu0 %v918
    %v1168 = vpop.f32.mrf.mxu0
    %v1169 = vadd.f32 %v961, %v1168
    %v1170 = vpop.f32.mrf.mxu0
    %v1171 = vadd.f32 %v961, %v1170
    %1172 = vdwg.mxu0
    %1173 = vmatpush.bf16.msra.mxu0 %v1109
    %1174 = vmatpush.bf16.msra.mxu0 %v1107
    %1175 = vmatpush.bf16.msra.mxu0 %v1105
    %1176 = vmatpush.bf16.msra.mxu0 %v1103
    %1177 = vmatpush.bf16.msra.mxu0 %v1101
    %1178 = vmatpush.bf16.msra.mxu0 %v1099
    %1179 = vmatpush.bf16.msra.mxu0 %v1097
    %1180 = vmatpush.bf16.msra.mxu0 %v1095
    %1181 = vmatmul.bf16.gmra.mxu0 %v919
    %v1182 = vpop.f32.mrf.mxu0
    %v1183 = vadd.f32 %v1169, %v1182
    %v1184 = vpop.f32.mrf.mxu0
    %v1185 = vadd.f32 %v1171, %v1184
    %1186 = vdwg.mxu0
    %1187 = vmatpush.bf16.msra.mxu0 0
    %1188 = vmatpush.bf16.msra.mxu0 0
    %1189 = vmatpush.bf16.msra.mxu0 0
    %1190 = vmatpush.bf16.msra.mxu0 0
    %1191 = vmatpush.bf16.msra.mxu0 0
    %1192 = vmatpush.bf16.msra.mxu0 %v1115
    %1193 = vmatpush.bf16.msra.mxu0 %v1113
    %1194 = vmatpush.bf16.msra.mxu0 %v1111
    %1195 = vmatmul.bf16.gmra.mxu0 %v1157
    %v1196 = vpop.f32.mrf.mxu0
    %v1197 = vadd.f32 %v1183, %v1196
    %v1198 = vpop.f32.mrf.mxu0
    %v1199 = vadd.f32 %v1185, %v1198
    %1200 = vdwg.mxu0
    %1201 = vmatpush.bf16.msra.mxu0 %v1094
    %1202 = vmatpush.bf16.msra.mxu0 %v1092
    %1203 = vmatpush.bf16.msra.mxu0 %v1090
    %1204 = vmatpush.bf16.msra.mxu0 %v1088
    %1205 = vmatpush.bf16.msra.mxu0 %v1086
    %1206 = vmatpush.bf16.msra.mxu0 %v1084
    %1207 = vmatpush.bf16.msra.mxu0 %v1082
    %1208 = vmatpush.bf16.msra.mxu0 %v1080
    %1209 = vmatmul.bf16.gmra.mxu0 %v918
    %v1210 = vpop.f32.mrf.mxu0
    %v1211 = vadd.f32 %v962, %v1210
    %v1212 = vpop.f32.mrf.mxu0
    %v1213 = vadd.f32 %v962, %v1212
    %1214 = vdwg.mxu0
    %1215 = vmatpush.bf16.msra.mxu0 %v1110
    %1216 = vmatpush.bf16.msra.mxu0 %v1108
    %1217 = vmatpush.bf16.msra.mxu0 %v1106
    %1218 = vmatpush.bf16.msra.mxu0 %v1104
    %1219 = vmatpush.bf16.msra.mxu0 %v1102
    %1220 = vmatpush.bf16.msra.mxu0 %v1100
    %1221 = vmatpush.bf16.msra.mxu0 %v1098
    %1222 = vmatpush.bf16.msra.mxu0 %v1096
    %1223 = vmatmul.bf16.gmra.mxu0 %v919
    %v1224 = vpop.f32.mrf.mxu0
    %v1225 = vadd.f32 %v1211, %v1224
    %v1226 = vpop.f32.mrf.mxu0
    %v1227 = vadd.f32 %v1213, %v1226
    %1228 = vdwg.mxu0
    %1229 = vmatpush.bf16.msra.mxu0 0
    %1230 = vmatpush.bf16.msra.mxu0 0
    %1231 = vmatpush.bf16.msra.mxu0 0
    %1232 = vmatpush.bf16.msra.mxu0 0
    %1233 = vmatpush.bf16.msra.mxu0 0
    %1234 = vmatpush.bf16.msra.mxu0 %v1116
    %1235 = vmatpush.bf16.msra.mxu0 %v1114
    %1236 = vmatpush.bf16.msra.mxu0 %v1112
    %1237 = vmatmul.bf16.gmra.mxu0 %v1157
    %v1238 = vpop.f32.mrf.mxu0
    %v1239 = vadd.f32 %v1225, %v1238
    %v1240 = vpop.f32.mrf.mxu0
    %v1241 = vadd.f32 %v1227, %v1240
    %1242 = vdwg.mxu0
    %vm1243 = vcmp.gt.f32.partialorder %v1197, 0.0
    %vm1244 = vcmp.gt.f32.partialorder %v1239, 0.0
    %vm1245 = vcmp.gt.f32.partialorder %v1199, 0.0
    %vm1246 = vcmp.gt.f32.partialorder %v1241, 0.0
    %v1247 = vmul.f32 %v1197, 0.1
    %v1248 = vmul.f32 %v1239, 0.1
    %v1249 = vmul.f32 %v1199, 0.1
    %v1250 = vmul.f32 %v1241, 0.1
    %v1251 = vsel %vm1243, %v1197, %v1247
    %v1252 = vsel %vm1244, %v1239, %v1248
    %v1253 = vsel %vm1245, %v1199, %v1249
    %v1254 = vsel %vm1246, %v1241, %v1250
    %v1255 = vpack.c.bf16 %v1253, %v1251
    %v1256 = vpack.c.bf16 %v1254, %v1252
    %v1257 = vld [vmem:[#allocation7] sm:$0xf]
    %v1258 = vld [vmem:[#allocation7 + $0x4] sm:$0xf]
    %v1259 = vld [vmem:[#allocation7 + $0x8] sm:$0xf]
    %v1260 = vld [vmem:[#allocation7 + $0xc] sm:$0xf]
    %v1261 = vld [vmem:[#allocation7 + $0x10] sm:$0xf]
    %v1262 = vld [vmem:[#allocation7 + $0x14] sm:$0xf]
    %v1263 = vld [vmem:[#allocation7 + $0x18] sm:$0xf]
    %v1264 = vld [vmem:[#allocation7 + $0x1c] sm:$0xf]
    %v1265 = vld [vmem:[#allocation7 + $0x20] sm:$0xf]
    %v1266 = vld [vmem:[#allocation7 + $0x24] sm:$0xf]
    %v1267 = vld [vmem:[#allocation7 + $0x28] sm:$0xf]
    %v1268 = vld [vmem:[#allocation7 + $0x2c] sm:$0xf]
    %v1269 = vld [vmem:[#allocation7 + $0x30] sm:$0xf]
    %v1270 = vld [vmem:[#allocation7 + $0x34] sm:$0xf]
    %v1271 = vld [vmem:[#allocation7 + $0x38] sm:$0xf]
    %v1272 = vld [vmem:[#allocation7 + $0x3c] sm:$0xf]
    %v1273 = vld [vmem:[#allocation7 + $0x40] sm:$0xf]
    %v1274 = vld [vmem:[#allocation7 + $0x44] sm:$0xf]
    %v1275 = vld [vmem:[#allocation7 + $0x48] sm:$0xf]
    %v1276 = vld [vmem:[#allocation7 + $0x4c] sm:$0xf]
    %v1277 = vld [vmem:[#allocation7 + $0x50] sm:$0xf]
    %v1278 = vld [vmem:[#allocation7 + $0x54] sm:$0xf]
    %v1279 = vld [vmem:[#allocation7 + $0x58] sm:$0xf]
    %v1280 = vld [vmem:[#allocation7 + $0x5c] sm:$0xf]
    %v1281 = vld [vmem:[#allocation7 + $0x60] sm:$0xf]
    %v1282 = vld [vmem:[#allocation7 + $0x64] sm:$0xf]
    %v1283 = vld [vmem:[%s8] sm:$0x1]
    %v1285 = vperm.slane %v1283, 0
    %v1313 = vunpack.c.l.b16 %v1257
    %v1314 = vunpack.c.l.b16 %v1258
    %v1315 = vunpack.c.l.b16 %v1259
    %v1316 = vunpack.c.l.b16 %v1260
    %v1317 = vunpack.c.l.b16 %v1261
    %v1318 = vunpack.c.l.b16 %v1262
    %v1319 = vunpack.c.l.b16 %v1263
    %v1320 = vunpack.c.l.b16 %v1264
    %v1321 = vunpack.c.l.b16 %v1265
    %v1322 = vunpack.c.l.b16 %v1266
    %v1323 = vunpack.c.l.b16 %v1267
    %v1324 = vunpack.c.l.b16 %v1268
    %v1325 = vunpack.c.l.b16 %v1269
    %v1326 = vunpack.c.l.b16 %v1270
    %v1327 = vunpack.c.l.b16 %v1271
    %v1328 = vunpack.c.l.b16 %v1272
    %v1329 = vunpack.c.l.b16 %v1273
    %v1330 = vunpack.c.l.b16 %v1274
    %v1331 = vunpack.c.l.b16 %v1275
    %v1332 = vunpack.c.l.b16 %v1276
    %v1333 = vunpack.c.l.b16 %v1277
    %v1334 = vunpack.c.l.b16 %v1278
    %v1335 = vunpack.c.l.b16 %v1279
    %v1336 = vunpack.c.l.b16 %v1280
    %v1337 = vunpack.c.l.b16 %v1281
    %v1338 = vunpack.c.l.b16 %v1282
    %v1339 = vpack.c.b16 %v1314, %v1313
    %v1340 = vpack.c.b16 %v1316, %v1315
    %v1341 = vpack.c.b16 %v1318, %v1317
    %v1342 = vpack.c.b16 %v1320, %v1319
    %v1343 = vpack.c.b16 %v1322, %v1321
    %v1344 = vpack.c.b16 %v1324, %v1323
    %v1345 = vpack.c.b16 %v1326, %v1325
    %v1346 = vpack.c.b16 %v1328, %v1327
    %v1347 = vpack.c.b16 %v1330, %v1329
    %v1348 = vpack.c.b16 %v1332, %v1331
    %v1349 = vpack.c.b16 %v1334, %v1333
    %v1350 = vpack.c.b16 %v1336, %v1335
    %v1351 = vpack.c.b16 %v1338, %v1337
    %vm1365 = vcmask 654336
    %v1367 = vsel %vm1365, %v1256, 0
    %1369 = vmatpush.bf16.msra.mxu0 %v1346
    %1370 = vmatpush.bf16.msra.mxu0 %v1345
    %1371 = vmatpush.bf16.msra.mxu0 %v1344
    %1372 = vmatpush.bf16.msra.mxu0 %v1343
    %1373 = vmatpush.bf16.msra.mxu0 %v1342
    %1374 = vmatpush.bf16.msra.mxu0 %v1341
    %1375 = vmatpush.bf16.msra.mxu0 %v1340
    %1376 = vmatpush.bf16.msra.mxu0 %v1339
    %1377 = vmatmul.bf16.gmra.mxu0 %v1255
    %v1378 = vpop.f32.mrf.mxu0
    %v1379 = vadd.f32 %v1285, %v1378
    %v1380 = vpop.f32.mrf.mxu0
    %v1381 = vadd.f32 %v1285, %v1380
    %1382 = vdwg.mxu0
    %1383 = vmatpush.bf16.msra.mxu0 0
    %1384 = vmatpush.bf16.msra.mxu0 0
    %1385 = vmatpush.bf16.msra.mxu0 0
    %1386 = vmatpush.bf16.msra.mxu0 %v1351
    %1387 = vmatpush.bf16.msra.mxu0 %v1350
    %1388 = vmatpush.bf16.msra.mxu0 %v1349
    %1389 = vmatpush.bf16.msra.mxu0 %v1348
    %1390 = vmatpush.bf16.msra.mxu0 %v1347
    %1391 = vmatmul.bf16.gmra.mxu0 %v1367
    %v1392 = vpop.f32.mrf.mxu0
    %v1393 = vadd.f32 %v1379, %v1392
    %v1394 = vpop.f32.mrf.mxu0
    %v1395 = vadd.f32 %v1381, %v1394
    %1396 = vdwg.mxu0
    %vm1397 = vcmp.gt.f32.partialorder %v1393, 0.0
    %vm1398 = vcmp.gt.f32.partialorder %v1395, 0.0
    %v1399 = vmul.f32 %v1393, 0.1
    %v1400 = vmul.f32 %v1395, 0.1
    %v1401 = vsel %vm1397, %v1393, %v1399
    %v1402 = vsel %vm1398, %v1395, %v1400
    %v1403 = vtanh.pop %v1401
    %v1404 = vtanh.pop %v1402
    %v1405 = vmul.f32 %v1403, 2.0
    %v1406 = vmul.f32 %v1404, 2.0
    %v1407 = vpack.c.bf16 %v1405, %v1405
    %v1408 = vpack.c.bf16 %v1406, %v1406
    %1409 = vst [vmem:[%s9] sm:$0xf] %v1407
    %1410 = vst [vmem:[%s9 + $0x4] sm:$0xf] %v1408
    // Predicated region
    $region54: #{actor_forward.1} parent=1 // pred_check
      _
    $region55: #{actor_forward.1} parent=1 // pred_check_branch
      %1412 = sbr.rel (0) target = $region57
    $region56: #{actor_forward.1} parent=1 // pred_region
      _
    $region57: #{actor_forward.1} parent=1 // pred_fallthru
      _
    // Predicated region
    $region58: #{actor_forward.1} parent=1 // pred_check
      _
    $region59: #{actor_forward.1} parent=1 // pred_check_branch
      %1414 = sbr.rel (0) target = $region61
    $region60: #{actor_forward.1} parent=1 // pred_region
      _
    $region61: #{actor_forward.1} parent=1 // pred_fallthru
      _
    %1415 = vsyncpa [#allocation3], 1
    %1416 = vsyncpa [#allocation5], 1
    %1417 = vsyncpa [#allocation8], 1

</llo_original>
